<compile_context>
chip_gen: v5e
topology: v5e:2x2
jax: 0.10.0
libtpu: 0.0.40
codegen_flags: <defaults>
</compile_context>

<pallas_src>
import numpy as np
import jax
import jax.numpy as jnp
from jax import lax
from jax.experimental import pallas as pl
from jax.experimental.pallas import tpu as pltpu

K = 4          # kernel size
STRIDE = 2
PAD = 1
EPS = 1e-5


def _phase_tap(ph, pw, ro, s):
    """(kh, kw) feeding output phase (ph, pw) from padded-row offset ro and
    column shift s, or None if that (ro, s) does not contribute."""
    r = ro - ph
    cc = s - pw + 1
    if 0 <= r <= 1 and 0 <= cc <= 1:
        return 3 - 2 * r - ph, 3 - 2 * cc - pw
    return None


# ------------------------------ JAX wrapper --------------------------------

def purple_forward(inp_main, inp_side, w_t, bias, gamma, beta):
    """inp_main: (N, C, H, W), inp_side: (N, Cs, 2H, 2W) -> (N, Cs+C, 2H, 2W)."""
    n, c, h, w = inp_main.shape
    hw = h * w
    ho, wo = 2 * h, 2 * w
    flat_len = (h + 2) * w + 4          # row-padded, flattened, 2-elem guards/side

    # Batch-fold factor: make the matmul/store lane dim (b_fold*hw) >= 128 when
    # the per-image spatial extent is small (perf review: lane-dense blocks).
    b_fold = min(n, max(1, pl.cdiv(128, hw)))
    while n % b_fold:
        b_fold -= 1
    n_chunks = n // b_fold
    lanes = b_fold * hw

    # glue (layout only): row-pad by 1, flatten spatial, add 2-elem guards.
    x = inp_main.astype(jnp.float32)
    x_flat = jnp.pad(x, ((0, 0), (0, 0), (1, 1), (0, 0))).reshape(n, c, (h + 2) * w)
    x_flat = jnp.pad(x_flat, ((0, 0), (0, 0), (2, 2)))            # (N, C, flat_len)
    x_chunks = x_flat.reshape(n_chunks, b_fold, c, flat_len)

    # glue (layout only): weight matrices.
    wt = w_t.astype(jnp.float32)
    tap9 = [(ro, s) for ro in range(3) for s in (-1, 0, 1)]
    fuse_phases = c <= 64               # single (4C,9C)@(9C,L) matmul for small C
    if fuse_phases:
        rows = []
        for ph in range(2):
            for pw in range(2):
                blocks = []
                for (ro, s) in tap9:
                    tap = _phase_tap(ph, pw, ro, s)
                    if tap is None:
                        blocks.append(jnp.zeros((c, c), jnp.float32))
                    else:
                        kh, kw = tap
                        blocks.append(wt[:, :, kh, kw].T)         # (Cout, Cin)
                rows.append(jnp.concatenate(blocks, axis=1))      # (Cout, 9*Cin)
        w_mat = jnp.concatenate(rows, axis=0)                     # (4*Cout, 9*Cin)
        w_spec = pl.BlockSpec((4 * c, 9 * c), lambda i: (0, 0))
    else:
        mats = []
        for ph in range(2):
            for pw in range(2):
                taps = []
                for r in range(2):
                    for cc in range(2):
                        kh = 3 - 2 * r - ph
                        kw = 3 - 2 * cc - pw
                        taps.append(wt[:, :, kh, kw].T)           # (Cout, Cin)
                mats.append(jnp.concatenate(taps, axis=1))        # (Cout, 4*Cin)
        w_mat = jnp.stack(mats, axis=0)                           # (4, Cout, 4*Cin)
        w_spec = pl.BlockSpec((4, c, 4 * c), lambda i: (0, 0, 0))

    b_col = jnp.tile(bias.astype(jnp.float32).reshape(1, c), (4, 1)).reshape(4 * c, 1)

    # ------------- kernel: conv-transpose (MXU) + BN partial stats ----------
    def convt_kernel(w_ref, b_ref, x_ref, o_ref, sum_ref, ssq_ref):
        col = lax.broadcasted_iota(jnp.int32, (1, lanes), 1) % w
        mask_l = (col != 0).astype(jnp.float32)        # kills wrapped col -1
        mask_r = (col != w - 1).astype(jnp.float32)    # kills wrapped col W

        # 9 distinct shifted slabs, built once; all phase patches reuse them.
        slabs = {}
        for ro in range(3):
            for s in (-1, 0, 1):
                start = 2 + ro * w + s                 # static, 1-elem guard margin
                parts = [x_ref[0, b, :, pl.ds(start, hw)] for b in range(b_fold)]
                slab = parts[0] if b_fold == 1 else jnp.concatenate(parts, axis=1)
                if s == -1:
                    slab = slab * mask_l
                elif s == 1:
                    slab = slab * mask_r
                slabs[(ro, s)] = slab                  # (Cin, lanes)

        if fuse_phases:
            patch = jnp.concatenate([slabs[t] for t in tap9], axis=0)   # (9C, lanes)
            y = jnp.dot(w_ref[...], patch,
                        preferred_element_type=jnp.float32) + b_ref[...]
            o_ref[0] = y                                                # (4C, lanes)
            sum_ref[0] = jnp.sum(y, axis=1, keepdims=True)
            ssq_ref[0] = jnp.sum(y * y, axis=1, keepdims=True)
        else:
            for ph in range(2):
                for pw in range(2):
                    p = 2 * ph + pw
                    taps = [(ph + r, pw + cc - 1)
                            for r in range(2) for cc in range(2)]
                    patch = jnp.concatenate([slabs[t] for t in taps], axis=0)
                    y = (jnp.dot(w_ref[p], patch,
                                 preferred_element_type=jnp.float32)
                         + b_ref[p * c:(p + 1) * c, :])
                    o_ref[0, p * c:(p + 1) * c, :] = y
                    sum_ref[0, p * c:(p + 1) * c, :] = jnp.sum(y, axis=1, keepdims=True)
                    ssq_ref[0, p * c:(p + 1) * c, :] = jnp.sum(y * y, axis=1,
                                                               keepdims=True)

    conv_ph, csum, cssq = pl.pallas_call(
        convt_kernel,
        out_shape=(
            jax.ShapeDtypeStruct((n_chunks, 4 * c, lanes), jnp.float32),  # phase-major
            jax.ShapeDtypeStruct((n_chunks, 4 * c, 1), jnp.float32),      # row sums
            jax.ShapeDtypeStruct((n_chunks, 4 * c, 1), jnp.float32),      # row sumsq
        ),
        grid=(n_chunks,),
        in_specs=[
            w_spec,
            pl.BlockSpec((4 * c, 1), lambda i: (0, 0)),
            pl.BlockSpec((1, b_fold, c, flat_len), lambda i: (i, 0, 0, 0)),
        ],
        out_specs=(
            pl.BlockSpec((1, 4 * c, lanes), lambda i: (i, 0, 0)),
            pl.BlockSpec((1, 4 * c, 1), lambda i: (i, 0, 0)),
            pl.BlockSpec((1, 4 * c, 1), lambda i: (i, 0, 0)),
        ),
        compiler_params=pltpu.CompilerParams(
            dimension_semantics=("parallel",),
            vmem_limit_bytes=32 * 1024 * 1024),
    )(w_mat, b_col, x_chunks)

    # Cross-chunk BN batch-stat combine on tiny (n_chunks, C) tensors (XLA glue).
    # Chan-style merge of per-chunk (sum, M2): avoids global E[x^2]-E[x]^2
    # cancellation; variance clamped at 0.
    cnt_i = float(b_fold * 4 * hw)                    # per-chunk pixel count
    cnt = float(n * ho * wo)
    sum_i = csum.reshape(n_chunks, 4, c).sum(axis=1)  # (n_chunks, C)
    ssq_i = cssq.reshape(n_chunks, 4, c).sum(axis=1)
    mean_i = sum_i / cnt_i
    m2_i = ssq_i - sum_i * mean_i
    mean = jnp.sum(sum_i, axis=0) / cnt
    m2 = jnp.sum(m2_i, axis=0) + jnp.sum(cnt_i * (mean_i - mean) ** 2, axis=0)
    var = jnp.maximum(m2 / cnt, 0.0)
    scale = gamma.astype(jnp.float32) / jnp.sqrt(var + EPS)
    shift = beta.astype(jnp.float32) - mean * scale

    # Single-pass epilogue (review option (a)): BN affine + ReLU + 2x2 sub-pixel
    # interleave + channel concat fused by XLA; conv_ph is read from HBM once.
    # TODO(synk): an in-kernel XLU lane-interleave epilogue writing straight into
    # the concat buffer would also fold in the side-input copy, but needs
    # block-strided lane stores Mosaic may reject.
    y = conv_ph.reshape(n_chunks, 2, 2, c, b_fold, h, w)          # (i,ph,pw,c,b,ih,iw)
    y = jnp.maximum(y * scale.reshape(1, 1, 1, c, 1, 1, 1)
                    + shift.reshape(1, 1, 1, c, 1, 1, 1), 0.0)
    y = jnp.transpose(y, (0, 4, 3, 5, 1, 6, 2))                   # (i,b,c,ih,ph,iw,pw)
    y = y.reshape(n, c, ho, wo)
    return jnp.concatenate([inp_side.astype(jnp.float32), y], axis=1)


purple_forward_jit = jax.jit(purple_forward)


# -------------------------- independent reference --------------------------

def reference_forward(x_main, x_side, w_t, bias, gamma, beta):
    x = np.asarray(x_main, np.float32)
    wt = np.asarray(w_t, np.float32)
    n, c, h, w = x.shape
    ho, wo = 2 * h, 2 * w
    conv = np.zeros((n, c, ho, wo), np.float32)
    for ih in range(h):
        for iw in range(w):
            for kh in range(K):
                for kw in range(K):
                    oh = ih * STRIDE - PAD + kh
                    ow = iw * STRIDE - PAD + kw
                    if 0 <= oh < ho and 0 <= ow < wo:
                        conv[:, :, oh, ow] += np.einsum(
                            "ni,io->no", x[:, :, ih, iw], wt[:, :, kh, kw])
    conv += np.asarray(bias)[None, :, None, None]
    mean = conv.mean(axis=(0, 2, 3))
    var = conv.var(axis=(0, 2, 3))
    y = (conv - mean[None, :, None, None]) / np.sqrt(var[None, :, None, None] + EPS)
    y = y * np.asarray(gamma)[None, :, None, None] + np.asarray(beta)[None, :, None, None]
    y = np.maximum(y, 0.0)
    return np.concatenate([np.asarray(x_side, np.float32), y], axis=1)


# ---------------------------------- main -----------------------------------

if __name__ == "__main__":
    N, C, H, W = 2, 4, 8, 8
    CS = C                        # side input channel count
    key = jax.random.PRNGKey(0)
    k1, k2, k3, k4, k5, k6 = jax.random.split(key, 6)

    inp_main = jax.random.normal(k1, (N, C, H, W), jnp.float32)
    inp_side = jax.random.normal(k2, (N, CS, 2 * H, 2 * W), jnp.float32)

    # ConvTranspose2d params: weight (in, out, K, K), bias (out,)
    w_t = 0.1 * jax.random.normal(k3, (C, C, K, K), jnp.float32)
    bias = 0.1 * jax.random.normal(k4, (C,), jnp.float32)
    # BatchNorm2d affine params
    gamma = 1.0 + 0.1 * jax.random.normal(k5, (C,), jnp.float32)
    beta = 0.1 * jax.random.normal(k6, (C,), jnp.float32)

    out = purple_forward_jit(inp_main, inp_side, w_t, bias, gamma, beta)
    out = jax.block_until_ready(out)

    ref = reference_forward(inp_main, inp_side, w_t, bias, gamma, beta)
    assert out.shape == (N, CS + C, 2 * H, 2 * W), out.shape
    np.testing.assert_allclose(np.asarray(out), ref, rtol=1e-4, atol=1e-4)

    print("KERNEL_OK")
</pallas_src>

<mosaic_0001>
module attributes {stable_mosaic.version = 11 : i64} {
  func.func @convt_kernel(%arg0: i32, %arg1: memref<16x36xf32, #tpu.memory_space<vmem>>, %arg2: memref<16x1xf32, #tpu.memory_space<vmem>>, %arg3: memref<1x2x4x84xf32, #tpu.memory_space<vmem>>, %arg4: memref<1x16x128xf32, #tpu.memory_space<vmem>>, %arg5: memref<1x16x1xf32, #tpu.memory_space<vmem>>, %arg6: memref<1x16x1xf32, #tpu.memory_space<vmem>>) attributes {dimension_semantics = [#tpu.dimension_semantics<parallel>], iteration_bounds = array<i64: 1>, scalar_prefetch = 0 : i64, scratch_operands = 0 : i64, tpu.core_type = #tpu.core_type<tc>, window_params = [{pipeline_mode = #tpu.pipeline_mode<synchronous>, transform_indices = @transform_0, window_bounds = array<i64: 16, 36>}, {pipeline_mode = #tpu.pipeline_mode<synchronous>, transform_indices = @transform_1, window_bounds = array<i64: 16, 1>}, {transform_indices = @transform_2, window_bounds = array<i64: 1, 2, 4, 84>}, {transform_indices = @transform_3, window_bounds = array<i64: 1, 16, 128>}, {transform_indices = @transform_4, window_bounds = array<i64: 1, 16, 1>}, {transform_indices = @transform_5, window_bounds = array<i64: 1, 16, 1>}]} {
    %0 = tpu.iota {dimensions = array<i32: 1>} : vector<1x128xi32>
    %c8_i32 = arith.constant 8 : i32
    %c0_i32 = arith.constant 0 : i32
    %1 = arith.cmpi eq, %c8_i32, %c0_i32 : i32
    %c1_i32 = arith.constant 1 : i32
    %2 = arith.select %1, %c1_i32, %c8_i32 : i32
    %3 = vector.broadcast %2 : i32 to vector<1x128xi32>
    %4 = arith.remsi %0, %3 : vector<1x128xi32>
    %c0_i32_0 = arith.constant 0 : i32
    %5 = vector.broadcast %c0_i32_0 : i32 to vector<1x128xi32>
    %6 = arith.cmpi ne, %4, %5 : vector<1x128xi32>
    %c0_i32_1 = arith.constant 0 : i32
    %7 = vector.broadcast %c0_i32_1 : i32 to vector<1x128xi32>
    %8 = arith.cmpi slt, %4, %7 : vector<1x128xi32>
    %c0_i32_2 = arith.constant 0 : i32
    %9 = arith.cmpi slt, %2, %c0_i32_2 : i32
    %10 = vector.broadcast %9 : i1 to vector<1x128xi1>
    %11 = vector.broadcast %10 : vector<1x128xi1> to vector<1x128xi1>
    %12 = arith.xori %8, %11 : vector<1x128xi1>
    %13 = arith.andi %12, %6 : vector<1x128xi1>
    %14 = vector.broadcast %2 : i32 to vector<1x128xi32>
    %15 = arith.addi %4, %14 : vector<1x128xi32>
    %16 = arith.select %13, %15, %4 : vector<1x128xi1>, vector<1x128xi32>
    %c0_i32_3 = arith.constant 0 : i32
    %17 = vector.broadcast %c0_i32_3 : i32 to vector<1x128xi32>
    %18 = arith.cmpi ne, %16, %17 : vector<1x128xi32>
    %19 = arith.extui %18 : vector<1x128xi1> to vector<1x128xi32>
    %20 = arith.sitofp %19 : vector<1x128xi32> to vector<1x128xf32>
    %c7_i32 = arith.constant 7 : i32
    %21 = vector.broadcast %c7_i32 : i32 to vector<1x128xi32>
    %22 = arith.cmpi ne, %16, %21 : vector<1x128xi32>
    %23 = arith.extui %22 : vector<1x128xi1> to vector<1x128xi32>
    %24 = arith.sitofp %23 : vector<1x128xi32> to vector<1x128xf32>
    %c0 = arith.constant 0 : index
    %c0_4 = arith.constant 0 : index
    %c0_5 = arith.constant 0 : index
    %c1 = arith.constant 1 : index
    %25 = vector.load %arg3[%c0, %c0_4, %c0_5, %c1] : memref<1x2x4x84xf32, #tpu.memory_space<vmem>>, vector<1x1x4x64xf32>
    %26 = vector.shape_cast %25 : vector<1x1x4x64xf32> to vector<4x64xf32>
    %c0_6 = arith.constant 0 : index
    %c1_7 = arith.constant 1 : index
    %c0_8 = arith.constant 0 : index
    %c1_9 = arith.constant 1 : index
    %27 = vector.load %arg3[%c0_6, %c1_7, %c0_8, %c1_9] : memref<1x2x4x84xf32, #tpu.memory_space<vmem>>, vector<1x1x4x64xf32>
    %28 = vector.shape_cast %27 : vector<1x1x4x64xf32> to vector<4x64xf32>
    %29 = tpu.concatenate %26, %28 in 1 : vector<4x64xf32>, vector<4x64xf32> -> vector<4x128xf32>
    %30 = vector.broadcast %20 : vector<1x128xf32> to vector<4x128xf32>
    %31 = arith.mulf %29, %30 : vector<4x128xf32>
    %c0_10 = arith.constant 0 : index
    %c0_11 = arith.constant 0 : index
    %c0_12 = arith.constant 0 : index
    %c2 = arith.constant 2 : index
    %32 = vector.load %arg3[%c0_10, %c0_11, %c0_12, %c2] : memref<1x2x4x84xf32, #tpu.memory_space<vmem>>, vector<1x1x4x64xf32>
    %33 = vector.shape_cast %32 : vector<1x1x4x64xf32> to vector<4x64xf32>
    %c0_13 = arith.constant 0 : index
    %c1_14 = arith.constant 1 : index
    %c0_15 = arith.constant 0 : index
    %c2_16 = arith.constant 2 : index
    %34 = vector.load %arg3[%c0_13, %c1_14, %c0_15, %c2_16] : memref<1x2x4x84xf32, #tpu.memory_space<vmem>>, vector<1x1x4x64xf32>
    %35 = vector.shape_cast %34 : vector<1x1x4x64xf32> to vector<4x64xf32>
    %36 = tpu.concatenate %33, %35 in 1 : vector<4x64xf32>, vector<4x64xf32> -> vector<4x128xf32>
    %c0_17 = arith.constant 0 : index
    %c0_18 = arith.constant 0 : index
    %c0_19 = arith.constant 0 : index
    %c3 = arith.constant 3 : index
    %37 = vector.load %arg3[%c0_17, %c0_18, %c0_19, %c3] : memref<1x2x4x84xf32, #tpu.memory_space<vmem>>, vector<1x1x4x64xf32>
    %38 = vector.shape_cast %37 : vector<1x1x4x64xf32> to vector<4x64xf32>
    %c0_20 = arith.constant 0 : index
    %c1_21 = arith.constant 1 : index
    %c0_22 = arith.constant 0 : index
    %c3_23 = arith.constant 3 : index
    %39 = vector.load %arg3[%c0_20, %c1_21, %c0_22, %c3_23] : memref<1x2x4x84xf32, #tpu.memory_space<vmem>>, vector<1x1x4x64xf32>
    %40 = vector.shape_cast %39 : vector<1x1x4x64xf32> to vector<4x64xf32>
    %41 = tpu.concatenate %38, %40 in 1 : vector<4x64xf32>, vector<4x64xf32> -> vector<4x128xf32>
    %42 = vector.broadcast %24 : vector<1x128xf32> to vector<4x128xf32>
    %43 = arith.mulf %41, %42 : vector<4x128xf32>
    %c0_24 = arith.constant 0 : index
    %c0_25 = arith.constant 0 : index
    %c0_26 = arith.constant 0 : index
    %c9 = arith.constant 9 : index
    %44 = vector.load %arg3[%c0_24, %c0_25, %c0_26, %c9] : memref<1x2x4x84xf32, #tpu.memory_space<vmem>>, vector<1x1x4x64xf32>
    %45 = vector.shape_cast %44 : vector<1x1x4x64xf32> to vector<4x64xf32>
    %c0_27 = arith.constant 0 : index
    %c1_28 = arith.constant 1 : index
    %c0_29 = arith.constant 0 : index
    %c9_30 = arith.constant 9 : index
    %46 = vector.load %arg3[%c0_27, %c1_28, %c0_29, %c9_30] : memref<1x2x4x84xf32, #tpu.memory_space<vmem>>, vector<1x1x4x64xf32>
    %47 = vector.shape_cast %46 : vector<1x1x4x64xf32> to vector<4x64xf32>
    %48 = tpu.concatenate %45, %47 in 1 : vector<4x64xf32>, vector<4x64xf32> -> vector<4x128xf32>
    %49 = vector.broadcast %20 : vector<1x128xf32> to vector<4x128xf32>
    %50 = arith.mulf %48, %49 : vector<4x128xf32>
    %c0_31 = arith.constant 0 : index
    %c0_32 = arith.constant 0 : index
    %c0_33 = arith.constant 0 : index
    %c10 = arith.constant 10 : index
    %51 = vector.load %arg3[%c0_31, %c0_32, %c0_33, %c10] : memref<1x2x4x84xf32, #tpu.memory_space<vmem>>, vector<1x1x4x64xf32>
    %52 = vector.shape_cast %51 : vector<1x1x4x64xf32> to vector<4x64xf32>
    %c0_34 = arith.constant 0 : index
    %c1_35 = arith.constant 1 : index
    %c0_36 = arith.constant 0 : index
    %c10_37 = arith.constant 10 : index
    %53 = vector.load %arg3[%c0_34, %c1_35, %c0_36, %c10_37] : memref<1x2x4x84xf32, #tpu.memory_space<vmem>>, vector<1x1x4x64xf32>
    %54 = vector.shape_cast %53 : vector<1x1x4x64xf32> to vector<4x64xf32>
    %55 = tpu.concatenate %52, %54 in 1 : vector<4x64xf32>, vector<4x64xf32> -> vector<4x128xf32>
    %c0_38 = arith.constant 0 : index
    %c0_39 = arith.constant 0 : index
    %c0_40 = arith.constant 0 : index
    %c11 = arith.constant 11 : index
    %56 = vector.load %arg3[%c0_38, %c0_39, %c0_40, %c11] : memref<1x2x4x84xf32, #tpu.memory_space<vmem>>, vector<1x1x4x64xf32>
    %57 = vector.shape_cast %56 : vector<1x1x4x64xf32> to vector<4x64xf32>
    %c0_41 = arith.constant 0 : index
    %c1_42 = arith.constant 1 : index
    %c0_43 = arith.constant 0 : index
    %c11_44 = arith.constant 11 : index
    %58 = vector.load %arg3[%c0_41, %c1_42, %c0_43, %c11_44] : memref<1x2x4x84xf32, #tpu.memory_space<vmem>>, vector<1x1x4x64xf32>
    %59 = vector.shape_cast %58 : vector<1x1x4x64xf32> to vector<4x64xf32>
    %60 = tpu.concatenate %57, %59 in 1 : vector<4x64xf32>, vector<4x64xf32> -> vector<4x128xf32>
    %61 = vector.broadcast %24 : vector<1x128xf32> to vector<4x128xf32>
    %62 = arith.mulf %60, %61 : vector<4x128xf32>
    %c0_45 = arith.constant 0 : index
    %c0_46 = arith.constant 0 : index
    %c0_47 = arith.constant 0 : index
    %c17 = arith.constant 17 : index
    %63 = vector.load %arg3[%c0_45, %c0_46, %c0_47, %c17] : memref<1x2x4x84xf32, #tpu.memory_space<vmem>>, vector<1x1x4x64xf32>
    %64 = vector.shape_cast %63 : vector<1x1x4x64xf32> to vector<4x64xf32>
    %c0_48 = arith.constant 0 : index
    %c1_49 = arith.constant 1 : index
    %c0_50 = arith.constant 0 : index
    %c17_51 = arith.constant 17 : index
    %65 = vector.load %arg3[%c0_48, %c1_49, %c0_50, %c17_51] : memref<1x2x4x84xf32, #tpu.memory_space<vmem>>, vector<1x1x4x64xf32>
    %66 = vector.shape_cast %65 : vector<1x1x4x64xf32> to vector<4x64xf32>
    %67 = tpu.concatenate %64, %66 in 1 : vector<4x64xf32>, vector<4x64xf32> -> vector<4x128xf32>
    %68 = vector.broadcast %20 : vector<1x128xf32> to vector<4x128xf32>
    %69 = arith.mulf %67, %68 : vector<4x128xf32>
    %c0_52 = arith.constant 0 : index
    %c0_53 = arith.constant 0 : index
    %c0_54 = arith.constant 0 : index
    %c18 = arith.constant 18 : index
    %70 = vector.load %arg3[%c0_52, %c0_53, %c0_54, %c18] : memref<1x2x4x84xf32, #tpu.memory_space<vmem>>, vector<1x1x4x64xf32>
    %71 = vector.shape_cast %70 : vector<1x1x4x64xf32> to vector<4x64xf32>
    %c0_55 = arith.constant 0 : index
    %c1_56 = arith.constant 1 : index
    %c0_57 = arith.constant 0 : index
    %c18_58 = arith.constant 18 : index
    %72 = vector.load %arg3[%c0_55, %c1_56, %c0_57, %c18_58] : memref<1x2x4x84xf32, #tpu.memory_space<vmem>>, vector<1x1x4x64xf32>
    %73 = vector.shape_cast %72 : vector<1x1x4x64xf32> to vector<4x64xf32>
    %74 = tpu.concatenate %71, %73 in 1 : vector<4x64xf32>, vector<4x64xf32> -> vector<4x128xf32>
    %c0_59 = arith.constant 0 : index
    %c0_60 = arith.constant 0 : index
    %c0_61 = arith.constant 0 : index
    %c19 = arith.constant 19 : index
    %75 = vector.load %arg3[%c0_59, %c0_60, %c0_61, %c19] : memref<1x2x4x84xf32, #tpu.memory_space<vmem>>, vector<1x1x4x64xf32>
    %76 = vector.shape_cast %75 : vector<1x1x4x64xf32> to vector<4x64xf32>
    %c0_62 = arith.constant 0 : index
    %c1_63 = arith.constant 1 : index
    %c0_64 = arith.constant 0 : index
    %c19_65 = arith.constant 19 : index
    %77 = vector.load %arg3[%c0_62, %c1_63, %c0_64, %c19_65] : memref<1x2x4x84xf32, #tpu.memory_space<vmem>>, vector<1x1x4x64xf32>
    %78 = vector.shape_cast %77 : vector<1x1x4x64xf32> to vector<4x64xf32>
    %79 = tpu.concatenate %76, %78 in 1 : vector<4x64xf32>, vector<4x64xf32> -> vector<4x128xf32>
    %80 = vector.broadcast %24 : vector<1x128xf32> to vector<4x128xf32>
    %81 = arith.mulf %79, %80 : vector<4x128xf32>
    %82 = tpu.concatenate %31, %36, %43, %50, %55, %62, %69, %74, %81 in 0 : vector<4x128xf32>, vector<4x128xf32>, vector<4x128xf32>, vector<4x128xf32>, vector<4x128xf32>, vector<4x128xf32>, vector<4x128xf32>, vector<4x128xf32>, vector<4x128xf32> -> vector<36x128xf32>
    %c0_66 = arith.constant 0 : index
    %c0_67 = arith.constant 0 : index
    %83 = vector.load %arg1[%c0_66, %c0_67] : memref<16x36xf32, #tpu.memory_space<vmem>>, vector<16x36xf32>
    %cst = arith.constant dense<0.000000e+00> : vector<16x128xf32>
    %84 = tpu.matmul %83, %82, %cst {dimension_numbers = #tpu.dot_dimension_numbers<[1], [0], [0], [1], [0, 0, 1, 1], [], []>} : vector<16x36xf32>, vector<36x128xf32>, vector<16x128xf32> -> vector<16x128xf32>
    %c0_68 = arith.constant 0 : index
    %c0_69 = arith.constant 0 : index
    %85 = vector.load %arg2[%c0_68, %c0_69] : memref<16x1xf32, #tpu.memory_space<vmem>>, vector<16x1xf32>
    %86 = vector.broadcast %85 : vector<16x1xf32> to vector<16x128xf32>
    %87 = arith.addf %84, %86 : vector<16x128xf32>
    %c0_70 = arith.constant 0 : index
    %c0_71 = arith.constant 0 : index
    %c0_72 = arith.constant 0 : index
    %88 = vector.load %arg4[%c0_70, %c0_71, %c0_72] : memref<1x16x128xf32, #tpu.memory_space<vmem>>, vector<1x16x128xf32>
    %89 = vector.shape_cast %88 : vector<1x16x128xf32> to vector<16x128xf32>
    %90 = vector.shape_cast %87 : vector<16x128xf32> to vector<1x16x128xf32>
    tpu.vector_store %arg4[%c0_70, %c0_71, %c0_72], %90 {strides = array<i32>} : memref<1x16x128xf32, #tpu.memory_space<vmem>>, vector<1x16x128xf32>,
    %cst_73 = arith.constant dense<0.000000e+00> : vector<16xf32>
    %91 = vector.multi_reduction <add>, %87, %cst_73 [1] : vector<16x128xf32> to vector<16xf32>
    %92 = vector.shape_cast %91 : vector<16xf32> to vector<16x1xf32>
    %c0_74 = arith.constant 0 : index
    %c0_75 = arith.constant 0 : index
    %c0_76 = arith.constant 0 : index
    %93 = vector.load %arg5[%c0_74, %c0_75, %c0_76] : memref<1x16x1xf32, #tpu.memory_space<vmem>>, vector<1x16x1xf32>
    %94 = vector.shape_cast %93 : vector<1x16x1xf32> to vector<16x1xf32>
    %95 = vector.shape_cast %92 : vector<16x1xf32> to vector<1x16x1xf32>
    tpu.vector_store %arg5[%c0_74, %c0_75, %c0_76], %95 {strides = array<i32>} : memref<1x16x1xf32, #tpu.memory_space<vmem>>, vector<1x16x1xf32>,
    %96 = arith.mulf %87, %87 : vector<16x128xf32>
    %cst_77 = arith.constant dense<0.000000e+00> : vector<16xf32>
    %97 = vector.multi_reduction <add>, %96, %cst_77 [1] : vector<16x128xf32> to vector<16xf32>
    %98 = vector.shape_cast %97 : vector<16xf32> to vector<16x1xf32>
    %c0_78 = arith.constant 0 : index
    %c0_79 = arith.constant 0 : index
    %c0_80 = arith.constant 0 : index
    %99 = vector.load %arg6[%c0_78, %c0_79, %c0_80] : memref<1x16x1xf32, #tpu.memory_space<vmem>>, vector<1x16x1xf32>
    %100 = vector.shape_cast %99 : vector<1x16x1xf32> to vector<16x1xf32>
    %101 = vector.shape_cast %98 : vector<16x1xf32> to vector<1x16x1xf32>
    tpu.vector_store %arg6[%c0_78, %c0_79, %c0_80], %101 {strides = array<i32>} : memref<1x16x1xf32, #tpu.memory_space<vmem>>, vector<1x16x1xf32>,
    return
  }
  func.func @transform_0(%arg0: i32) -> (i32, i32) {
    %c0_i32 = arith.constant 0 : i32
    %c0_i32_0 = arith.constant 0 : i32
    %c0_i32_1 = arith.constant 0 : i32
    return %c0_i32, %c0_i32_0 : i32, i32
  }
  func.func @transform_1(%arg0: i32) -> (i32, i32) {
    %c0_i32 = arith.constant 0 : i32
    %c0_i32_0 = arith.constant 0 : i32
    %c0_i32_1 = arith.constant 0 : i32
    return %c0_i32, %c0_i32_0 : i32, i32
  }
  func.func @transform_2(%arg0: i32) -> (i32, i32, i32, i32) {
    %c0_i32 = arith.constant 0 : i32
    %c0_i32_0 = arith.constant 0 : i32
    %c0_i32_1 = arith.constant 0 : i32
    %c0_i32_2 = arith.constant 0 : i32
    return %arg0, %c0_i32, %c0_i32_0, %c0_i32_1 : i32, i32, i32, i32
  }
  func.func @transform_3(%arg0: i32) -> (i32, i32, i32) {
    %c0_i32 = arith.constant 0 : i32
    %c0_i32_0 = arith.constant 0 : i32
    %c0_i32_1 = arith.constant 0 : i32
    return %arg0, %c0_i32, %c0_i32_0 : i32, i32, i32
  }
  func.func @transform_4(%arg0: i32) -> (i32, i32, i32) {
    %c0_i32 = arith.constant 0 : i32
    %c0_i32_0 = arith.constant 0 : i32
    %c0_i32_1 = arith.constant 0 : i32
    return %arg0, %c0_i32, %c0_i32_0 : i32, i32, i32
  }
  func.func @transform_5(%arg0: i32) -> (i32, i32, i32) {
    %c0_i32 = arith.constant 0 : i32
    %c0_i32_0 = arith.constant 0 : i32
    %c0_i32_1 = arith.constant 0 : i32
    return %arg0, %c0_i32, %c0_i32_0 : i32, i32, i32
  }
}

</mosaic_0001>

<llo_original>
// kernel: tile.6
$region0: #{tile.6}
  #allocation0 [shape = 's32[1]{0}', space=sflag, size = 0x4, scoped, tag = 'scoped memory for tile.6']
  %s0 = inlined_call_operand.vmem [shape: f32[4], index: 0, kind: input, shape index: {}]
  %s1 = inlined_call_operand.vmem [shape: f32[4,1,1,4], index: 1, kind: output, shape index: {}]
  // Predicated region
  $region2: #{tile.6} parent=0 // pred_check
    _
  $region3: #{tile.6} parent=0 // pred_check_branch
    %3 = sbr.rel (0) target = $region5
  $region4: #{tile.6} parent=0 // pred_region
    _
  $region5: #{tile.6} parent=0 // pred_fallthru
    _
  %v4 = vld [vmem:[%s0] ss:$0 sm:$0xff]
  %5 = vst [vmem:[%s1] sm:$0xf] %v4

// kernel: tile.0
$region0: #{tile.0}
  %s0 = inlined_call_operand.vmem [shape: f32[4,1,1,4], index: 0, kind: input, shape index: {}]
  %s1 = inlined_call_operand.vmem [shape: f32[16,1], index: 1, kind: output, shape index: {}]
  $region1: #{tile.0} parent=0
    #allocation0 [shape = 'u8[4096]{0}', space=vmem, size = 0x1000, scoped, tag = 'scoped mem for input reshape']
    %s3 = ssub.s32 16, 1
    %v4 = vld [vmem:[%s0] sm:%s3]
    %5 = vst [vmem:[#allocation0] sm:%s3] %v4
    %v6 = vld [vmem:[#allocation0] sm:$0xf]
    %vm7 = vcmask 7168
    %8 = vst.msk [vmem:[%s1] ss:$4 sm:$0xf] %vm7, %v6
    %v9 = vld [vmem:[#allocation0] sm:$0xf]
    %10 = vrot.lane.b32.xlu0 %v9, 127
    %v11 = vpop.permute.xlu0 %10
    %vm12 = vcmask 7168
    %s13 = scalar_lea.vmem %s1, 1
    %14 = vst.msk [vmem:[%s13] ss:$4 sm:$0xf] %vm12, %v11
    %v15 = vld [vmem:[#allocation0] sm:$0xf]
    %16 = vrot.lane.b32.xlu0 %v15, 126
    %v17 = vpop.permute.xlu0 %16
    %vm18 = vcmask 7168
    %s19 = scalar_lea.vmem %s1, 2
    %20 = vst.msk [vmem:[%s19] ss:$4 sm:$0xf] %vm18, %v17
    %v21 = vld [vmem:[#allocation0] sm:$0xf]
    %22 = vrot.lane.b32.xlu0 %v21, 125
    %v23 = vpop.permute.xlu0 %22
    %vm24 = vcmask 7168
    %s25 = scalar_lea.vmem %s1, 3
    %26 = vst.msk [vmem:[%s25] ss:$4 sm:$0xf] %vm24, %v23

// kernel: purple_forward.1
$region0: #{purple_forward.1}
  #allocation0 [shape = 'u32[]', space=smem, size = 0x4, offset = 0x4, fixed_abs, tag = 'smem constant byte address 0x4 - core index']
  #allocation1 [shape = 'u32[72,128]{1,0:T(1,128)}', space=vmem, size = 0x9000, scoped, tag = 'internal scratch']
  %s0 = inlined_call_operand.vmem [shape: f32[16,36], index: 0, kind: input, shape index: {}]
  %s1 = inlined_call_operand.vmem [shape: f32[16,1], index: 1, kind: input, shape index: {}]
  %s2 = inlined_call_operand.vmem [shape: f32[1,2,4,84], index: 2, kind: input, shape index: {}]
  %s3 = inlined_call_operand.vmem [shape: f32[1,16,128], index: 3, kind: output, shape index: {0}]
  %s4 = inlined_call_operand.vmem [shape: f32[1,16,1], index: 4, kind: output, shape index: {1}]
  %s5 = inlined_call_operand.vmem [shape: f32[1,16,1], index: 5, kind: output, shape index: {2}]
  %6 = xla_tuple %s3, %s4, %s5
  %s7 = sld [smem:[#allocation0]]
  $region38: #{purple_forward.1} parent=0
    _
  %s9 = ssub.s32 1, %s7
  %s10 = scalar_select 0, %s9, %s7
  // Predicated region
  $region2: #{purple_forward.1} parent=0 // pred_check
    _
  $region3: #{purple_forward.1} parent=0 // pred_check_branch
    %12 = sbr.rel (0) target = $region5
  $region4: #{purple_forward.1} parent=0 // pred_region
    _
  $region5: #{purple_forward.1} parent=0 // pred_fallthru
    _
  // Predicated region
  $region6: #{purple_forward.1} parent=0 // pred_check
    _
  $region7: #{purple_forward.1} parent=0 // pred_check_branch
    %14 = sbr.rel (0) target = $region9
  $region8: #{purple_forward.1} parent=0 // pred_region
    _
  $region9: #{purple_forward.1} parent=0 // pred_fallthru
    _
  // Predicated region
  $region10: #{purple_forward.1} parent=0 // pred_check
    _
  $region11: #{purple_forward.1} parent=0 // pred_check_branch
    %16 = sbr.rel (0) target = $region13
  $region12: #{purple_forward.1} parent=0 // pred_region
    _
  $region13: #{purple_forward.1} parent=0 // pred_fallthru
    _
  %v17 = vlaneseq
  %v18 = vand.u32 %v17, 127
  %vm19 = vcmp.lt.s32.totalorder %v18, 0
  %v20 = vsub.s32 0, %v18
  %v21 = vsel %vm19, %v20, %v18
  %v22 = vshrl.u32 %v21, 3
  %v23 = vand.u32 %v21, 7
  %v24 = vsub.s32 0, %v23
  %v25 = vsel %vm19, %v24, %v23
  %vm26 = vcmp.ne.s32.totalorder %v25, 0
  %vm27 = vcmp.lt.s32.totalorder %v25, 0
  %vm28 = vmand %vm27, %vm26
  %v29 = vadd.s32 %v25, 8
  %v30 = vsel %vm28, %v29, %v25
  %vm31 = vcmp.ne.s32.totalorder %v30, 0
  %v32 = vsel %vm31, 1, 0
  %v33 = vcvt.s32.f32 %v32
  %vm34 = vcmp.ne.s32.totalorder %v30, 7
  %v35 = vsel %vm34, 1, 0
  %v36 = vcvt.s32.f32 %v35
  %v37 = vld [vmem:[%s2] sm:$0xf]
  %s38 = scalar_lea.vmem %s2, 4
  %v39 = vld [vmem:[%s38] sm:$0xf]
  %41 = vrot.lane.b32.xlu0 %v37, 127
  %v42 = vpop.permute.xlu0 %41
  %45 = vrot.lane.b32.xlu0 %v39, 63
  %v46 = vpop.permute.xlu0 %45
  %vm48 = vcmask 523264
  %v49 = vsel %vm48, %v42, %v46
  %v50 = vmul.f32 %v49, %v33
  %51 = vrot.lane.b32.xlu0 %v37, 126
  %v52 = vpop.permute.xlu0 %51
  %54 = vrot.lane.b32.xlu0 %v39, 62
  %v55 = vpop.permute.xlu0 %54
  %v57 = vsel %vm48, %v52, %v55
  %58 = vrot.lane.b32.xlu0 %v37, 125
  %v59 = vpop.permute.xlu0 %58
  %61 = vrot.lane.b32.xlu0 %v39, 61
  %v62 = vpop.permute.xlu0 %61
  %v64 = vsel %vm48, %v59, %v62
  %v65 = vmul.f32 %v64, %v36
  %66 = vrot.lane.b32.xlu0 %v37, 119
  %v67 = vpop.permute.xlu0 %66
  %69 = vrot.lane.b32.xlu0 %v39, 55
  %v70 = vpop.permute.xlu0 %69
  %v72 = vsel %vm48, %v67, %v70
  %v73 = vmul.f32 %v72, %v33
  %74 = vrot.lane.b32.xlu0 %v37, 118
  %v75 = vpop.permute.xlu0 %74
  %77 = vrot.lane.b32.xlu0 %v39, 54
  %v78 = vpop.permute.xlu0 %77
  %v80 = vsel %vm48, %v75, %v78
  %81 = vrot.lane.b32.xlu0 %v37, 117
  %v82 = vpop.permute.xlu0 %81
  %84 = vrot.lane.b32.xlu0 %v39, 53
  %v85 = vpop.permute.xlu0 %84
  %v87 = vsel %vm48, %v82, %v85
  %v88 = vmul.f32 %v87, %v36
  %89 = vrot.lane.b32.xlu0 %v37, 111
  %v90 = vpop.permute.xlu0 %89
  %92 = vrot.lane.b32.xlu0 %v39, 47
  %v93 = vpop.permute.xlu0 %92
  %v95 = vsel %vm48, %v90, %v93
  %v96 = vmul.f32 %v95, %v33
  %97 = vrot.lane.b32.xlu0 %v37, 110
  %v98 = vpop.permute.xlu0 %97
  %100 = vrot.lane.b32.xlu0 %v39, 46
  %v101 = vpop.permute.xlu0 %100
  %v103 = vsel %vm48, %v98, %v101
  %104 = vrot.lane.b32.xlu0 %v37, 109
  %v105 = vpop.permute.xlu0 %104
  %107 = vrot.lane.b32.xlu0 %v39, 45
  %v108 = vpop.permute.xlu0 %107
  %v110 = vsel %vm48, %v105, %v108
  %v111 = vmul.f32 %v110, %v36
  %v113 = vrot.slane %v57, 4
  %v116 = vrot.slane %v73, 4
  %v119 = vrot.slane %v88, 4
  %v122 = vrot.slane %v103, 4
  %vm124 = vcmask 1043456
  %v125 = vsel %vm124, %v50, %v113
  %v126 = vsel %vm124, %v65, %v116
  %v127 = vsel %vm124, %v80, %v119
  %v128 = vsel %vm124, %v96, %v122
  %v129 = vld [vmem:[%s0] sm:$0xff]
  %v130 = vld [vmem:[%s0 + $0x8] sm:$0xff]
  %v131 = vld [vmem:[%s1] sm:$0xff]
  %v132 = vld [vmem:[%s1 + $0x8] sm:$0xff]
  %134 = vset.pattern.permute.xlu0 0
  %135 = vperm.xlu0 %134, %v131
  %v136 = vpop.permute.xlu0 %135
  %139 = vset.pattern.permute.xlu0 0
  %140 = vperm.xlu0 %139, %v132
  %v141 = vpop.permute.xlu0 %140
  %vm143 = vcmask 293888
  %v145 = vsel %vm143, %v129, 0
  %v148 = vsel %vm143, %v130, 0
  %v151 = vsel %vm124, %v111, 0
  %153 = vmatpush.msra.mxu0 0.0
  %154 = vmatpush.msra.mxu0 0.0
  %155 = vmatpush.msra.mxu0 0.0
  %156 = vmatpush.msra.mxu0 0.0
  %157 = vmatpush.msra.mxu0 0.0
  %158 = vmatpush.msra.mxu0 0.0
  %159 = vmatpush.msra.mxu0 0.0
  %160 = vmatpush.msra.mxu0 0.0
  %161 = vmatpush.msra.mxu0 0.0
  %162 = vmatpush.msra.mxu0 0.0
  %163 = vmatpush.msra.mxu0 0.0
  %164 = vmatpush.msra.mxu0 %v151
  %165 = vmatpush.msra.mxu0 %v128
  %166 = vmatpush.msra.mxu0 %v127
  %167 = vmatpush.msra.mxu0 %v126
  %168 = vmatpush.msra.mxu0 %v125
  %169 = vmatmul.f32.gmra.mxu0 %v145
  %v170 = vpop.f32.mrf.mxu0
  %v171 = vadd.f32 %v136, %v170
  %172 = vmatmul.f32.gmra.mxu0 %v148
  %v173 = vpop.f32.mrf.mxu0
  %v174 = vadd.f32 %v141, %v173
  %175 = vdwg.mxu0
  %176 = vst [vmem:[%s3] sm:$0xff] %v171
  %177 = vst [vmem:[%s3 + $0x8] sm:$0xff] %v174
  %178 = vadd.xlane.f32.xlu0 %v171
  %v179 = vpop.xlane.xlu0 %178
  %180 = vadd.xlane.f32.xlu0 %v174
  %v181 = vpop.xlane.xlu0 %180
  %vm182 = vcmask 7168
  %183 = vst.msk [vmem:[%s4] sm:$0xff] %vm182, %v179
  %184 = vst.msk [vmem:[%s4 + $0x8] sm:$0xff] %vm182, %v181
  %v185 = vmul.f32 %v171, %v171
  %v186 = vmul.f32 %v174, %v174
  %187 = vadd.xlane.f32.xlu0 %v185
  %v188 = vpop.xlane.xlu0 %187
  %189 = vadd.xlane.f32.xlu0 %v186
  %v190 = vpop.xlane.xlu0 %189
  %191 = vst.msk [vmem:[%s5] sm:$0xff] %vm182, %v188
  %192 = vst.msk [vmem:[%s5 + $0x8] sm:$0xff] %vm182, %v190
  // Predicated region
  $region14: #{purple_forward.1} parent=0 // pred_check
    _
  $region15: #{purple_forward.1} parent=0 // pred_check_branch
    %194 = sbr.rel (0) target = $region17
  $region16: #{purple_forward.1} parent=0 // pred_region
    _
  $region17: #{purple_forward.1} parent=0 // pred_fallthru
    _
  // Predicated region
  $region18: #{purple_forward.1} parent=0 // pred_check
    _
  $region19: #{purple_forward.1} parent=0 // pred_check_branch
    %196 = sbr.rel (0) target = $region21
  $region20: #{purple_forward.1} parent=0 // pred_region
    _
  $region21: #{purple_forward.1} parent=0 // pred_fallthru
    _
  // Predicated region
  $region22: #{purple_forward.1} parent=0 // pred_check
    _
  $region23: #{purple_forward.1} parent=0 // pred_check_branch
    %198 = sbr.rel (0) target = $region25
  $region24: #{purple_forward.1} parent=0 // pred_region
    _
  $region25: #{purple_forward.1} parent=0 // pred_fallthru
    _
  // Predicated region
  $region26: #{purple_forward.1} parent=0 // pred_check
    _
  $region27: #{purple_forward.1} parent=0 // pred_check_branch
    %200 = sbr.rel (0) target = $region29
  $region28: #{purple_forward.1} parent=0 // pred_region
    _
  $region29: #{purple_forward.1} parent=0 // pred_fallthru
    _
  // Predicated region
  $region30: #{purple_forward.1} parent=0 // pred_check
    _
  $region31: #{purple_forward.1} parent=0 // pred_check_branch
    %202 = sbr.rel (0) target = $region33
  $region32: #{purple_forward.1} parent=0 // pred_region
    _
  $region33: #{purple_forward.1} parent=0 // pred_fallthru
    _
  // Predicated region
  $region34: #{purple_forward.1} parent=0 // pred_check
    _
  $region35: #{purple_forward.1} parent=0 // pred_check_branch
    %204 = sbr.rel (0) target = $region37
  $region36: #{purple_forward.1} parent=0 // pred_region
    _
  $region37: #{purple_forward.1} parent=0 // pred_fallthru
    _

</llo_original>
